<compile_context>
chip_gen: v6e
topology: v6e:2x2x1
jax: 0.10.0
libtpu: 0.0.40
codegen_flags: <defaults>
</compile_context>

<pallas_src>
import numpy as np
import jax
import jax.numpy as jnp
from jax.experimental import pallas as pl
from jax.experimental.pallas import tpu as pltpu

EPS = 1e-5


def _full_spec(shape):
    return pl.BlockSpec(shape, lambda i: (0,) * len(shape))


def basic_block_t(x_rows, w1_big, w2_big, g1, b1, g2, b2):
    """x_rows: (N, H, W*C) f32 lane-dense activations.
    w*_big:   (3, W*C, W*C) bf16 per-kh block-Toeplitz row-conv weights.
    g*/b*:    (1, C) f32 BatchNorm affine params (tiled to (1, W*C) here)."""
    # TODO(synk): production plan (not needed at this toy shape, single block):
    #  * Tile the grid over N / H row-bands marked "parallel" so both v7x
    #    TensorCores are used and DMA/compute pipeline; training-mode BN then
    #    needs a cross-tile sum/sum-of-squares reduction (two-phase kernel, or
    #    partial stats accumulated in CMEM/VMEM_SHARED and finalized on one core).
    #  * H-band tiling needs an explicit +-1 row halo (overlapping windows via
    #    pl.Element index_map or a manual make_async_copy with 1-row overlap),
    #    or recompute of band-boundary rows - Blocked BlockSpecs cannot overlap.
    #  * Re-derive the tile budget for v7x's 64 MiB VMEM (double-buffered x band
    #    + bf16 LHS + f32 conv output + both 3*(WC)^2*2B weights) and raise
    #    vmem_limit_bytes explicitly with headroom.
    #  * The block-Toeplitz form does 3*W*C^2 MACs/output pixel vs 9*C^2 useful
    #    (W/3x waste) and its weight scales as W^2; keep it only for tiny C
    #    (C=8 here, per-tap K=8 would starve the MXU).  For C >= ~64 switch to
    #    per-tap (N*H*W, Ci)@(Ci, Co) channel-contraction matmuls with shifted
    #    LHS - FLOP-minimal and lets the matmul N dim reach 256 for the v6e/v7x
    #    256-wide MXU (on v5e the 128-wide output here is already a perfect fit).
    N, H, WC = x_rows.shape
    C = g1.shape[-1]
    assert WC % C == 0
    W = WC // C
    assert W >= 1 and (W & (W - 1)) == 0, "butterfly BN fold assumes power-of-two W"
    NH = N * H
    M = N * H * W                                  # BN batch size (pixels)
    inv_m = 1.0 / M

    # Pre-tile gamma/beta to the lane-dense (1, W*C) layout (wrapper-side, cheap).
    g1t = jnp.tile(g1.reshape(1, C), (1, W))
    b1t = jnp.tile(b1.reshape(1, C), (1, W))
    g2t = jnp.tile(g2.reshape(1, C), (1, W))
    b2t = jnp.tile(b2.reshape(1, C), (1, W))

    def kernel(x_ref, w1_ref, w2_ref, g1_ref, b1_ref, g2_ref, b2_ref, o_ref):
        # Image-row index (0..H-1) of every flattened (n,h) row, for halo masks.
        h_idx = jax.lax.broadcasted_iota(jnp.int32, (N, H, WC), 1).reshape(NH, WC)

        def conv3x3(a_f32, w_ref):
            # a_f32: (N*H, W*C) f32.  Early single bf16 cast (no LHS blow-up).
            a = a_f32.astype(jnp.bfloat16)
            # One matmul per vertical tap against the kh-slice of the
            # block-Toeplitz weight (horizontal taps + horizontal zero-padding
            # are folded into the weight).
            y0 = jnp.dot(a, w_ref[0], preferred_element_type=jnp.float32)
            y1 = jnp.dot(a, w_ref[1], preferred_element_type=jnp.float32)
            y2 = jnp.dot(a, w_ref[2], preferred_element_type=jnp.float32)
            # Vertical taps via output-side row shifts on the XLU; mask the
            # first/last row of each image (implements vertical zero-padding
            # and prevents bleed across images in the flattened N*H axis).
            y0s = jnp.where(h_idx == 0, 0.0,
                            pltpu.roll(y0, shift=1, axis=0))        # y0[h-1]
            y2s = jnp.where(h_idx == H - 1, 0.0,
                            pltpu.roll(y2, shift=NH - 1, axis=0))   # y2[h+1]
            return y1 + y0s + y2s                                   # (N*H, W*C) f32

        def batchnorm(y, g_ref, b_ref):
            # Training-mode BatchNorm2d (biased batch stats), single pass.
            s = jnp.sum(y, axis=0, keepdims=True)          # (1, W*C)
            ss = jnp.sum(y * y, axis=0, keepdims=True)     # (1, W*C)
            # Butterfly all-reduce across the W channel-groups (log2(W) XLU
            # rolls); afterwards lane w*C+ci holds the full per-channel sum.
            sh = WC // 2
            while sh >= C:
                s = s + pltpu.roll(s, shift=sh, axis=1)
                ss = ss + pltpu.roll(ss, shift=sh, axis=1)
                sh //= 2
            mean = s * inv_m
            var = jnp.maximum(ss * inv_m - mean * mean, 0.0)   # clamp cancellation
            scale = g_ref[...] * jax.lax.rsqrt(var + EPS)      # (1, W*C), pre-tiled
            shift = b_ref[...] - mean * scale
            return y * scale + shift

        out = conv3x3(x_ref[...].reshape(NH, WC), w1_ref)
        out = jnp.maximum(batchnorm(out, g1_ref, b1_ref), 0.0)
        out = conv3x3(out, w2_ref)
        out = batchnorm(out, g2_ref, b2_ref)
        # upsample is None -> identity = x; re-read x_ref (already in VMEM)
        # instead of keeping an f32 copy live across both convs/BNs.
        out = jnp.maximum(out + x_ref[...].reshape(NH, WC), 0.0)
        o_ref[...] = out.reshape(N, H, WC).astype(o_ref.dtype)   # lane-dense store

    cost = pl.CostEstimate(
        flops=2 * (2 * NH * (3 * WC) * WC),
        transcendentals=0,
        bytes_accessed=(2 * x_rows.size * x_rows.dtype.itemsize
                        + w1_big.size * w1_big.dtype.itemsize
                        + w2_big.size * w2_big.dtype.itemsize
                        + 4 * WC * 4))

    return pl.pallas_call(
        kernel,
        out_shape=jax.ShapeDtypeStruct((N, H, WC), x_rows.dtype),
        grid=(1,),
        in_specs=[
            _full_spec((N, H, WC)),
            _full_spec((3, WC, WC)),
            _full_spec((3, WC, WC)),
            _full_spec((1, WC)),
            _full_spec((1, WC)),
            _full_spec((1, WC)),
            _full_spec((1, WC)),
        ],
        out_specs=_full_spec((N, H, WC)),
        compiler_params=pltpu.CompilerParams(
            dimension_semantics=("arbitrary",)),
        cost_estimate=cost,
    )(x_rows, w1_big, w2_big, g1t, b1t, g2t, b2t)


# ----- parameter construction & pure-JAX reference (glue, not hot path) -----

def xavier_uniform(key, shape):
    # shape = (Cin, Cout, kH, kW) (PyTorch ConvTranspose2d weight layout)
    rf = shape[2] * shape[3]
    fan_in = shape[1] * rf
    fan_out = shape[0] * rf
    a = (6.0 / (fan_in + fan_out)) ** 0.5
    return jax.random.uniform(key, shape, jnp.float32, minval=-a, maxval=a)


def convt_weight_to_rowconv(w_t, W, dtype=jnp.bfloat16):
    """ConvTranspose2d weight (Cin, Cout, 3, 3), s=1, p=1 -> per-kh block-Toeplitz
    (3, W*Cin, W*Cout) matrices so three matmuls compute a whole image row.

    Equivalent "same"-conv weight: Wc[kh, kw, ci, co] = w_t[ci, co, 2-kh, 2-kw].
    big[kh, win, ci, w, co] = Wc[kh, win-w+1, ci, co] for |win - w| <= 1; taps
    that fall outside the row are absent, which implements the horizontal
    zero-padding.  Built once in numpy (not the hot path)."""
    Ci, Co = int(w_t.shape[0]), int(w_t.shape[1])
    wc = np.asarray(jnp.flip(w_t, axis=(2, 3)).transpose(2, 3, 0, 1))  # HWIO
    big = np.zeros((3, W, Ci, W, Co), np.float32)
    for kh in range(3):
        for kw in range(3):
            for w in range(W):
                win = w + kw - 1
                if 0 <= win < W:
                    big[kh, win, :, w, :] = wc[kh, kw]
    return jnp.asarray(big.reshape(3, W * Ci, W * Co), dtype=dtype)


def ref_forward(x_nchw, w1_t, w2_t, g1, b1, g2, b2):
    def convT(x, w):
        wc = jnp.flip(w, axis=(2, 3)).transpose(1, 0, 2, 3)  # OIHW
        return jax.lax.conv_general_dilated(
            x, wc, (1, 1), ((1, 1), (1, 1)),
            dimension_numbers=("NCHW", "OIHW", "NCHW"))

    def bn(y, g, b):
        mean = y.mean(axis=(0, 2, 3), keepdims=True)
        var = ((y - mean) ** 2).mean(axis=(0, 2, 3), keepdims=True)
        return ((y - mean) / jnp.sqrt(var + EPS)
                * g.reshape(1, -1, 1, 1) + b.reshape(1, -1, 1, 1))

    out = jnp.maximum(bn(convT(x_nchw, w1_t), g1, b1), 0.0)
    out = bn(convT(out, w2_t), g2, b2)
    return jnp.maximum(out + x_nchw, 0.0)


if __name__ == "__main__":
    N, C, H, W = 2, 8, 16, 16   # W * C == 128 -> exactly one lane tile per image row

    key = jax.random.PRNGKey(0)
    kx, kw1, kw2, kg1, kg2, kb1, kb2 = jax.random.split(key, 7)

    x_nchw = jax.random.normal(kx, (N, C, H, W), jnp.float32)

    # ConvTranspose2d weights in PyTorch layout (Cin, Cout, 3, 3), xavier_uniform.
    w1_t = xavier_uniform(kw1, (C, C, 3, 3))
    w2_t = xavier_uniform(kw2, (C, C, 3, 3))

    # TODO(synk): nn.init.xavier_uniform_ on the 1-D BatchNorm weight raises in
    # PyTorch; BN affine params are initialized deterministically here instead.
    g1 = jax.random.uniform(kg1, (C,), jnp.float32, 0.5, 1.5)
    g2 = jax.random.uniform(kg2, (C,), jnp.float32, 0.5, 1.5)
    b1 = jax.random.uniform(kb1, (C,), jnp.float32, -0.1, 0.1)
    b2 = jax.random.uniform(kb2, (C,), jnp.float32, -0.1, 0.1)

    # NCHW -> lane-dense (N, H, W*C); weights -> bf16 per-kh block-Toeplitz form.
    x_rows = jnp.transpose(x_nchw, (0, 2, 3, 1)).reshape(N, H, W * C)
    w1_big = convt_weight_to_rowconv(w1_t, W)
    w2_big = convt_weight_to_rowconv(w2_t, W)

    out_rows = basic_block_t(x_rows, w1_big, w2_big,
                             g1.reshape(1, C), b1.reshape(1, C),
                             g2.reshape(1, C), b2.reshape(1, C))
    out_rows = jax.block_until_ready(out_rows)
    out_nchw = jnp.transpose(out_rows.reshape(N, H, W, C), (0, 3, 1, 2))

    ref = ref_forward(x_nchw, w1_t, w2_t, g1, b1, g2, b2)
    # bf16 MXU operands (f32 accumulation) vs. the all-f32 reference -> looser tol.
    max_err = float(jnp.max(jnp.abs(out_nchw - ref)))
    assert jnp.allclose(out_nchw, ref, atol=6e-2, rtol=6e-2), max_err

    print("KERNEL_OK")
</pallas_src>

<mosaic_0001>
module attributes {stable_mosaic.version = 11 : i64} {
  func.func @kernel(%arg0: i32, %arg1: memref<2x16x128xf32, #tpu.memory_space<vmem>>, %arg2: memref<3x128x128xbf16, #tpu.memory_space<vmem>>, %arg3: memref<3x128x128xbf16, #tpu.memory_space<vmem>>, %arg4: memref<1x128xf32, #tpu.memory_space<vmem>>, %arg5: memref<1x128xf32, #tpu.memory_space<vmem>>, %arg6: memref<1x128xf32, #tpu.memory_space<vmem>>, %arg7: memref<1x128xf32, #tpu.memory_space<vmem>>, %arg8: memref<2x16x128xf32, #tpu.memory_space<vmem>>) attributes {dimension_semantics = [#tpu.dimension_semantics<arbitrary>], iteration_bounds = array<i64: 1>, scalar_prefetch = 0 : i64, scratch_operands = 0 : i64, tpu.core_type = #tpu.core_type<tc>, window_params = [{pipeline_mode = #tpu.pipeline_mode<synchronous>, transform_indices = @transform_0, window_bounds = array<i64: 2, 16, 128>}, {pipeline_mode = #tpu.pipeline_mode<synchronous>, transform_indices = @transform_1, window_bounds = array<i64: 3, 128, 128>}, {pipeline_mode = #tpu.pipeline_mode<synchronous>, transform_indices = @transform_2, window_bounds = array<i64: 3, 128, 128>}, {pipeline_mode = #tpu.pipeline_mode<synchronous>, transform_indices = @transform_3, window_bounds = array<i64: 1, 128>}, {pipeline_mode = #tpu.pipeline_mode<synchronous>, transform_indices = @transform_4, window_bounds = array<i64: 1, 128>}, {pipeline_mode = #tpu.pipeline_mode<synchronous>, transform_indices = @transform_5, window_bounds = array<i64: 1, 128>}, {pipeline_mode = #tpu.pipeline_mode<synchronous>, transform_indices = @transform_6, window_bounds = array<i64: 1, 128>}, {pipeline_mode = #tpu.pipeline_mode<synchronous>, transform_indices = @transform_7, window_bounds = array<i64: 2, 16, 128>}]} {
    %0 = tpu.iota {dimensions = array<i32: 1>} : vector<2x16x128xi32>
    %1 = vector.shape_cast %0 : vector<2x16x128xi32> to vector<32x128xi32>
    %c0 = arith.constant 0 : index
    %c0_0 = arith.constant 0 : index
    %c0_1 = arith.constant 0 : index
    %2 = vector.load %arg1[%c0, %c0_0, %c0_1] : memref<2x16x128xf32, #tpu.memory_space<vmem>>, vector<2x16x128xf32>
    %3 = vector.shape_cast %2 : vector<2x16x128xf32> to vector<32x128xf32>
    %4 = arith.truncf %3 : vector<32x128xf32> to vector<32x128xbf16>
    %c0_2 = arith.constant 0 : index
    %c0_3 = arith.constant 0 : index
    %c0_4 = arith.constant 0 : index
    %5 = vector.load %arg2[%c0_2, %c0_3, %c0_4] : memref<3x128x128xbf16, #tpu.memory_space<vmem>>, vector<1x128x128xbf16>
    %6 = vector.shape_cast %5 : vector<1x128x128xbf16> to vector<128x128xbf16>
    %cst = arith.constant dense<0.000000e+00> : vector<32x128xf32>
    %7 = tpu.matmul %4, %6, %cst {dimension_numbers = #tpu.dot_dimension_numbers<[1], [0], [0], [1], [0, 0, 1, 1], [], []>} : vector<32x128xbf16>, vector<128x128xbf16>, vector<32x128xf32> -> vector<32x128xf32>
    %c1 = arith.constant 1 : index
    %c0_5 = arith.constant 0 : index
    %c0_6 = arith.constant 0 : index
    %8 = vector.load %arg2[%c1, %c0_5, %c0_6] : memref<3x128x128xbf16, #tpu.memory_space<vmem>>, vector<1x128x128xbf16>
    %9 = vector.shape_cast %8 : vector<1x128x128xbf16> to vector<128x128xbf16>
    %cst_7 = arith.constant dense<0.000000e+00> : vector<32x128xf32>
    %10 = tpu.matmul %4, %9, %cst_7 {dimension_numbers = #tpu.dot_dimension_numbers<[1], [0], [0], [1], [0, 0, 1, 1], [], []>} : vector<32x128xbf16>, vector<128x128xbf16>, vector<32x128xf32> -> vector<32x128xf32>
    %c2 = arith.constant 2 : index
    %c0_8 = arith.constant 0 : index
    %c0_9 = arith.constant 0 : index
    %11 = vector.load %arg2[%c2, %c0_8, %c0_9] : memref<3x128x128xbf16, #tpu.memory_space<vmem>>, vector<1x128x128xbf16>
    %12 = vector.shape_cast %11 : vector<1x128x128xbf16> to vector<128x128xbf16>
    %cst_10 = arith.constant dense<0.000000e+00> : vector<32x128xf32>
    %13 = tpu.matmul %4, %12, %cst_10 {dimension_numbers = #tpu.dot_dimension_numbers<[1], [0], [0], [1], [0, 0, 1, 1], [], []>} : vector<32x128xbf16>, vector<128x128xbf16>, vector<32x128xf32> -> vector<32x128xf32>
    %c0_i32 = arith.constant 0 : i32
    %14 = vector.broadcast %c0_i32 : i32 to vector<32x128xi32>
    %15 = arith.cmpi eq, %1, %14 : vector<32x128xi32>
    %c1_i32 = arith.constant 1 : i32
    %16 = tpu.dynamic_rotate %7 by %c1_i32 dim 0 : vector<32x128xf32>, i32 -> vector<32x128xf32>
    %cst_11 = arith.constant 0.000000e+00 : f32
    %17 = vector.broadcast %cst_11 : f32 to vector<32x128xf32>
    %18 = arith.select %15, %17, %16 : vector<32x128xi1>, vector<32x128xf32>
    %c15_i32 = arith.constant 15 : i32
    %19 = vector.broadcast %c15_i32 : i32 to vector<32x128xi32>
    %20 = arith.cmpi eq, %1, %19 : vector<32x128xi32>
    %c31_i32 = arith.constant 31 : i32
    %21 = tpu.dynamic_rotate %13 by %c31_i32 dim 0 : vector<32x128xf32>, i32 -> vector<32x128xf32>
    %cst_12 = arith.constant 0.000000e+00 : f32
    %22 = vector.broadcast %cst_12 : f32 to vector<32x128xf32>
    %23 = arith.select %20, %22, %21 : vector<32x128xi1>, vector<32x128xf32>
    %24 = arith.addf %10, %18 : vector<32x128xf32>
    %25 = arith.addf %24, %23 : vector<32x128xf32>
    %cst_13 = arith.constant dense<0.000000e+00> : vector<128xf32>
    %26 = vector.multi_reduction <add>, %25, %cst_13 [0] : vector<32x128xf32> to vector<128xf32>
    %27 = vector.shape_cast %26 : vector<128xf32> to vector<1x128xf32>
    %28 = arith.mulf %25, %25 : vector<32x128xf32>
    %cst_14 = arith.constant dense<0.000000e+00> : vector<128xf32>
    %29 = vector.multi_reduction <add>, %28, %cst_14 [0] : vector<32x128xf32> to vector<128xf32>
    %30 = vector.shape_cast %29 : vector<128xf32> to vector<1x128xf32>
    %c64_i32 = arith.constant 64 : i32
    %31 = tpu.dynamic_rotate %27 by %c64_i32 dim 1 : vector<1x128xf32>, i32 -> vector<1x128xf32>
    %32 = arith.addf %27, %31 : vector<1x128xf32>
    %c64_i32_15 = arith.constant 64 : i32
    %33 = tpu.dynamic_rotate %30 by %c64_i32_15 dim 1 : vector<1x128xf32>, i32 -> vector<1x128xf32>
    %34 = arith.addf %30, %33 : vector<1x128xf32>
    %c32_i32 = arith.constant 32 : i32
    %35 = tpu.dynamic_rotate %32 by %c32_i32 dim 1 : vector<1x128xf32>, i32 -> vector<1x128xf32>
    %36 = arith.addf %32, %35 : vector<1x128xf32>
    %c32_i32_16 = arith.constant 32 : i32
    %37 = tpu.dynamic_rotate %34 by %c32_i32_16 dim 1 : vector<1x128xf32>, i32 -> vector<1x128xf32>
    %38 = arith.addf %34, %37 : vector<1x128xf32>
    %c16_i32 = arith.constant 16 : i32
    %39 = tpu.dynamic_rotate %36 by %c16_i32 dim 1 : vector<1x128xf32>, i32 -> vector<1x128xf32>
    %40 = arith.addf %36, %39 : vector<1x128xf32>
    %c16_i32_17 = arith.constant 16 : i32
    %41 = tpu.dynamic_rotate %38 by %c16_i32_17 dim 1 : vector<1x128xf32>, i32 -> vector<1x128xf32>
    %42 = arith.addf %38, %41 : vector<1x128xf32>
    %c8_i32 = arith.constant 8 : i32
    %43 = tpu.dynamic_rotate %40 by %c8_i32 dim 1 : vector<1x128xf32>, i32 -> vector<1x128xf32>
    %44 = arith.addf %40, %43 : vector<1x128xf32>
    %c8_i32_18 = arith.constant 8 : i32
    %45 = tpu.dynamic_rotate %42 by %c8_i32_18 dim 1 : vector<1x128xf32>, i32 -> vector<1x128xf32>
    %46 = arith.addf %42, %45 : vector<1x128xf32>
    %cst_19 = arith.constant 0.001953125 : f32
    %47 = vector.broadcast %cst_19 : f32 to vector<1x128xf32>
    %48 = arith.mulf %44, %47 : vector<1x128xf32>
    %cst_20 = arith.constant 0.001953125 : f32
    %49 = vector.broadcast %cst_20 : f32 to vector<1x128xf32>
    %50 = arith.mulf %46, %49 : vector<1x128xf32>
    %51 = arith.mulf %48, %48 : vector<1x128xf32>
    %52 = arith.subf %50, %51 : vector<1x128xf32>
    %cst_21 = arith.constant 0.000000e+00 : f32
    %53 = vector.broadcast %cst_21 : f32 to vector<1x128xf32>
    %54 = arith.maximumf %52, %53 : vector<1x128xf32>
    %c0_22 = arith.constant 0 : index
    %c0_23 = arith.constant 0 : index
    %55 = vector.load %arg4[%c0_22, %c0_23] : memref<1x128xf32, #tpu.memory_space<vmem>>, vector<1x128xf32>
    %cst_24 = arith.constant 9.99999974E-6 : f32
    %56 = vector.broadcast %cst_24 : f32 to vector<1x128xf32>
    %57 = arith.addf %54, %56 : vector<1x128xf32>
    %58 = math.rsqrt %57 : vector<1x128xf32>
    %59 = arith.mulf %55, %58 : vector<1x128xf32>
    %c0_25 = arith.constant 0 : index
    %c0_26 = arith.constant 0 : index
    %60 = vector.load %arg5[%c0_25, %c0_26] : memref<1x128xf32, #tpu.memory_space<vmem>>, vector<1x128xf32>
    %61 = arith.mulf %48, %59 : vector<1x128xf32>
    %62 = arith.subf %60, %61 : vector<1x128xf32>
    %63 = vector.broadcast %59 : vector<1x128xf32> to vector<32x128xf32>
    %64 = arith.mulf %25, %63 : vector<32x128xf32>
    %65 = vector.broadcast %62 : vector<1x128xf32> to vector<32x128xf32>
    %66 = arith.addf %64, %65 : vector<32x128xf32>
    %cst_27 = arith.constant 0.000000e+00 : f32
    %67 = vector.broadcast %cst_27 : f32 to vector<32x128xf32>
    %68 = arith.maximumf %66, %67 : vector<32x128xf32>
    %69 = arith.truncf %68 : vector<32x128xf32> to vector<32x128xbf16>
    %c0_28 = arith.constant 0 : index
    %c0_29 = arith.constant 0 : index
    %c0_30 = arith.constant 0 : index
    %70 = vector.load %arg3[%c0_28, %c0_29, %c0_30] : memref<3x128x128xbf16, #tpu.memory_space<vmem>>, vector<1x128x128xbf16>
    %71 = vector.shape_cast %70 : vector<1x128x128xbf16> to vector<128x128xbf16>
    %cst_31 = arith.constant dense<0.000000e+00> : vector<32x128xf32>
    %72 = tpu.matmul %69, %71, %cst_31 {dimension_numbers = #tpu.dot_dimension_numbers<[1], [0], [0], [1], [0, 0, 1, 1], [], []>} : vector<32x128xbf16>, vector<128x128xbf16>, vector<32x128xf32> -> vector<32x128xf32>
    %c1_32 = arith.constant 1 : index
    %c0_33 = arith.constant 0 : index
    %c0_34 = arith.constant 0 : index
    %73 = vector.load %arg3[%c1_32, %c0_33, %c0_34] : memref<3x128x128xbf16, #tpu.memory_space<vmem>>, vector<1x128x128xbf16>
    %74 = vector.shape_cast %73 : vector<1x128x128xbf16> to vector<128x128xbf16>
    %cst_35 = arith.constant dense<0.000000e+00> : vector<32x128xf32>
    %75 = tpu.matmul %69, %74, %cst_35 {dimension_numbers = #tpu.dot_dimension_numbers<[1], [0], [0], [1], [0, 0, 1, 1], [], []>} : vector<32x128xbf16>, vector<128x128xbf16>, vector<32x128xf32> -> vector<32x128xf32>
    %c2_36 = arith.constant 2 : index
    %c0_37 = arith.constant 0 : index
    %c0_38 = arith.constant 0 : index
    %76 = vector.load %arg3[%c2_36, %c0_37, %c0_38] : memref<3x128x128xbf16, #tpu.memory_space<vmem>>, vector<1x128x128xbf16>
    %77 = vector.shape_cast %76 : vector<1x128x128xbf16> to vector<128x128xbf16>
    %cst_39 = arith.constant dense<0.000000e+00> : vector<32x128xf32>
    %78 = tpu.matmul %69, %77, %cst_39 {dimension_numbers = #tpu.dot_dimension_numbers<[1], [0], [0], [1], [0, 0, 1, 1], [], []>} : vector<32x128xbf16>, vector<128x128xbf16>, vector<32x128xf32> -> vector<32x128xf32>
    %c0_i32_40 = arith.constant 0 : i32
    %79 = vector.broadcast %c0_i32_40 : i32 to vector<32x128xi32>
    %80 = arith.cmpi eq, %1, %79 : vector<32x128xi32>
    %c1_i32_41 = arith.constant 1 : i32
    %81 = tpu.dynamic_rotate %72 by %c1_i32_41 dim 0 : vector<32x128xf32>, i32 -> vector<32x128xf32>
    %cst_42 = arith.constant 0.000000e+00 : f32
    %82 = vector.broadcast %cst_42 : f32 to vector<32x128xf32>
    %83 = arith.select %80, %82, %81 : vector<32x128xi1>, vector<32x128xf32>
    %c15_i32_43 = arith.constant 15 : i32
    %84 = vector.broadcast %c15_i32_43 : i32 to vector<32x128xi32>
    %85 = arith.cmpi eq, %1, %84 : vector<32x128xi32>
    %c31_i32_44 = arith.constant 31 : i32
    %86 = tpu.dynamic_rotate %78 by %c31_i32_44 dim 0 : vector<32x128xf32>, i32 -> vector<32x128xf32>
    %cst_45 = arith.constant 0.000000e+00 : f32
    %87 = vector.broadcast %cst_45 : f32 to vector<32x128xf32>
    %88 = arith.select %85, %87, %86 : vector<32x128xi1>, vector<32x128xf32>
    %89 = arith.addf %75, %83 : vector<32x128xf32>
    %90 = arith.addf %89, %88 : vector<32x128xf32>
    %cst_46 = arith.constant dense<0.000000e+00> : vector<128xf32>
    %91 = vector.multi_reduction <add>, %90, %cst_46 [0] : vector<32x128xf32> to vector<128xf32>
    %92 = vector.shape_cast %91 : vector<128xf32> to vector<1x128xf32>
    %93 = arith.mulf %90, %90 : vector<32x128xf32>
    %cst_47 = arith.constant dense<0.000000e+00> : vector<128xf32>
    %94 = vector.multi_reduction <add>, %93, %cst_47 [0] : vector<32x128xf32> to vector<128xf32>
    %95 = vector.shape_cast %94 : vector<128xf32> to vector<1x128xf32>
    %c64_i32_48 = arith.constant 64 : i32
    %96 = tpu.dynamic_rotate %92 by %c64_i32_48 dim 1 : vector<1x128xf32>, i32 -> vector<1x128xf32>
    %97 = arith.addf %92, %96 : vector<1x128xf32>
    %c64_i32_49 = arith.constant 64 : i32
    %98 = tpu.dynamic_rotate %95 by %c64_i32_49 dim 1 : vector<1x128xf32>, i32 -> vector<1x128xf32>
    %99 = arith.addf %95, %98 : vector<1x128xf32>
    %c32_i32_50 = arith.constant 32 : i32
    %100 = tpu.dynamic_rotate %97 by %c32_i32_50 dim 1 : vector<1x128xf32>, i32 -> vector<1x128xf32>
    %101 = arith.addf %97, %100 : vector<1x128xf32>
    %c32_i32_51 = arith.constant 32 : i32
    %102 = tpu.dynamic_rotate %99 by %c32_i32_51 dim 1 : vector<1x128xf32>, i32 -> vector<1x128xf32>
    %103 = arith.addf %99, %102 : vector<1x128xf32>
    %c16_i32_52 = arith.constant 16 : i32
    %104 = tpu.dynamic_rotate %101 by %c16_i32_52 dim 1 : vector<1x128xf32>, i32 -> vector<1x128xf32>
    %105 = arith.addf %101, %104 : vector<1x128xf32>
    %c16_i32_53 = arith.constant 16 : i32
    %106 = tpu.dynamic_rotate %103 by %c16_i32_53 dim 1 : vector<1x128xf32>, i32 -> vector<1x128xf32>
    %107 = arith.addf %103, %106 : vector<1x128xf32>
    %c8_i32_54 = arith.constant 8 : i32
    %108 = tpu.dynamic_rotate %105 by %c8_i32_54 dim 1 : vector<1x128xf32>, i32 -> vector<1x128xf32>
    %109 = arith.addf %105, %108 : vector<1x128xf32>
    %c8_i32_55 = arith.constant 8 : i32
    %110 = tpu.dynamic_rotate %107 by %c8_i32_55 dim 1 : vector<1x128xf32>, i32 -> vector<1x128xf32>
    %111 = arith.addf %107, %110 : vector<1x128xf32>
    %cst_56 = arith.constant 0.001953125 : f32
    %112 = vector.broadcast %cst_56 : f32 to vector<1x128xf32>
    %113 = arith.mulf %109, %112 : vector<1x128xf32>
    %cst_57 = arith.constant 0.001953125 : f32
    %114 = vector.broadcast %cst_57 : f32 to vector<1x128xf32>
    %115 = arith.mulf %111, %114 : vector<1x128xf32>
    %116 = arith.mulf %113, %113 : vector<1x128xf32>
    %117 = arith.subf %115, %116 : vector<1x128xf32>
    %cst_58 = arith.constant 0.000000e+00 : f32
    %118 = vector.broadcast %cst_58 : f32 to vector<1x128xf32>
    %119 = arith.maximumf %117, %118 : vector<1x128xf32>
    %c0_59 = arith.constant 0 : index
    %c0_60 = arith.constant 0 : index
    %120 = vector.load %arg6[%c0_59, %c0_60] : memref<1x128xf32, #tpu.memory_space<vmem>>, vector<1x128xf32>
    %cst_61 = arith.constant 9.99999974E-6 : f32
    %121 = vector.broadcast %cst_61 : f32 to vector<1x128xf32>
    %122 = arith.addf %119, %121 : vector<1x128xf32>
    %123 = math.rsqrt %122 : vector<1x128xf32>
    %124 = arith.mulf %120, %123 : vector<1x128xf32>
    %c0_62 = arith.constant 0 : index
    %c0_63 = arith.constant 0 : index
    %125 = vector.load %arg7[%c0_62, %c0_63] : memref<1x128xf32, #tpu.memory_space<vmem>>, vector<1x128xf32>
    %126 = arith.mulf %113, %124 : vector<1x128xf32>
    %127 = arith.subf %125, %126 : vector<1x128xf32>
    %128 = vector.broadcast %124 : vector<1x128xf32> to vector<32x128xf32>
    %129 = arith.mulf %90, %128 : vector<32x128xf32>
    %130 = vector.broadcast %127 : vector<1x128xf32> to vector<32x128xf32>
    %131 = arith.addf %129, %130 : vector<32x128xf32>
    %c0_64 = arith.constant 0 : index
    %c0_65 = arith.constant 0 : index
    %c0_66 = arith.constant 0 : index
    %132 = vector.load %arg1[%c0_64, %c0_65, %c0_66] : memref<2x16x128xf32, #tpu.memory_space<vmem>>, vector<2x16x128xf32>
    %133 = vector.shape_cast %132 : vector<2x16x128xf32> to vector<32x128xf32>
    %134 = arith.addf %131, %133 : vector<32x128xf32>
    %cst_67 = arith.constant 0.000000e+00 : f32
    %135 = vector.broadcast %cst_67 : f32 to vector<32x128xf32>
    %136 = arith.maximumf %134, %135 : vector<32x128xf32>
    %137 = vector.shape_cast %136 : vector<32x128xf32> to vector<2x16x128xf32>
    %c0_68 = arith.constant 0 : index
    %c0_69 = arith.constant 0 : index
    %c0_70 = arith.constant 0 : index
    %138 = vector.load %arg8[%c0_68, %c0_69, %c0_70] : memref<2x16x128xf32, #tpu.memory_space<vmem>>, vector<2x16x128xf32>
    tpu.vector_store %arg8[%c0_68, %c0_69, %c0_70], %137 {strides = array<i32>} : memref<2x16x128xf32, #tpu.memory_space<vmem>>, vector<2x16x128xf32>,
    return
  }
  func.func @transform_0(%arg0: i32) -> (i32, i32, i32) {
    %c0_i32 = arith.constant 0 : i32
    %c0_i32_0 = arith.constant 0 : i32
    %c0_i32_1 = arith.constant 0 : i32
    %c0_i32_2 = arith.constant 0 : i32
    return %c0_i32, %c0_i32_0, %c0_i32_1 : i32, i32, i32
  }
  func.func @transform_1(%arg0: i32) -> (i32, i32, i32) {
    %c0_i32 = arith.constant 0 : i32
    %c0_i32_0 = arith.constant 0 : i32
    %c0_i32_1 = arith.constant 0 : i32
    %c0_i32_2 = arith.constant 0 : i32
    return %c0_i32, %c0_i32_0, %c0_i32_1 : i32, i32, i32
  }
  func.func @transform_2(%arg0: i32) -> (i32, i32, i32) {
    %c0_i32 = arith.constant 0 : i32
    %c0_i32_0 = arith.constant 0 : i32
    %c0_i32_1 = arith.constant 0 : i32
    %c0_i32_2 = arith.constant 0 : i32
    return %c0_i32, %c0_i32_0, %c0_i32_1 : i32, i32, i32
  }
  func.func @transform_3(%arg0: i32) -> (i32, i32) {
    %c0_i32 = arith.constant 0 : i32
    %c0_i32_0 = arith.constant 0 : i32
    %c0_i32_1 = arith.constant 0 : i32
    return %c0_i32, %c0_i32_0 : i32, i32
  }
  func.func @transform_4(%arg0: i32) -> (i32, i32) {
    %c0_i32 = arith.constant 0 : i32
    %c0_i32_0 = arith.constant 0 : i32
    %c0_i32_1 = arith.constant 0 : i32
    return %c0_i32, %c0_i32_0 : i32, i32
  }
  func.func @transform_5(%arg0: i32) -> (i32, i32) {
    %c0_i32 = arith.constant 0 : i32
    %c0_i32_0 = arith.constant 0 : i32
    %c0_i32_1 = arith.constant 0 : i32
    return %c0_i32, %c0_i32_0 : i32, i32
  }
  func.func @transform_6(%arg0: i32) -> (i32, i32) {
    %c0_i32 = arith.constant 0 : i32
    %c0_i32_0 = arith.constant 0 : i32
    %c0_i32_1 = arith.constant 0 : i32
    return %c0_i32, %c0_i32_0 : i32, i32
  }
  func.func @transform_7(%arg0: i32) -> (i32, i32, i32) {
    %c0_i32 = arith.constant 0 : i32
    %c0_i32_0 = arith.constant 0 : i32
    %c0_i32_1 = arith.constant 0 : i32
    %c0_i32_2 = arith.constant 0 : i32
    return %c0_i32, %c0_i32_0, %c0_i32_1 : i32, i32, i32
  }
}

</mosaic_0001>

<llo_original>
// kernel: tpu_custom_call.1
$region0: #{tpu_custom_call.1}
  #allocation0 [shape = 'u32[]', space=smem, size = 0x4, offset = 0x4, fixed_abs, tag = 'smem constant byte address 0x4 - core index']
  #allocation1 [shape = 'u32[144,128]{1,0:T(1,128)}', space=vmem, size = 0x12000, scoped, tag = 'internal scratch']
  %s0 = inlined_call_operand.hbm [shape: f32[2,16,128], index: 0, kind: input, shape index: {}]
  %s1 = inlined_call_operand.hbm [shape: bf16[3,128,128], index: 1, kind: input, shape index: {}]
  %s2 = inlined_call_operand.hbm [shape: bf16[3,128,128], index: 2, kind: input, shape index: {}]
  %s3 = inlined_call_operand.vmem [shape: f32[1,128], index: 3, kind: input, shape index: {}]
  %s4 = inlined_call_operand.vmem [shape: f32[1,128], index: 4, kind: input, shape index: {}]
  %s5 = inlined_call_operand.vmem [shape: f32[1,128], index: 5, kind: input, shape index: {}]
  %s6 = inlined_call_operand.vmem [shape: f32[1,128], index: 6, kind: input, shape index: {}]
  %s7 = inlined_call_operand.hbm [shape: f32[2,16,128], index: 7, kind: output, shape index: {}]
  %s8 = sld [smem:[#allocation0]]
  $region50: #{tpu_custom_call.1} parent=0
    _
  %s10 = ssub.s32 1, %s8
  %s11 = scalar_select 0, %s10, %s8
  $region1: #{tpu_custom_call.1} parent=0
    #allocation2 [shape = 'u8[16384]{0}', space=vmem, size = 0x4000, scoped, tag = 'input window, operand 0, single buffered']
    #allocation3 [shape = 's32[1]{0}', space=sflag, size = 0x4, scoped, tag = 'scoped memory for tpu_custom_call.1']
    #allocation4 [shape = 's32[1]{0}', space=sflag, size = 0x4, scoped, tag = 'scoped memory for tpu_custom_call.1']
    #allocation5 [shape = 'u8[98304]{0}', space=vmem, size = 0x18000, scoped, tag = 'input window, operand 1, single buffered']
    #allocation6 [shape = 's32[1]{0}', space=sflag, size = 0x4, scoped, tag = 'scoped memory for tpu_custom_call.1']
    #allocation7 [shape = 'u8[98304]{0}', space=vmem, size = 0x18000, scoped, tag = 'input window, operand 2, single buffered']
    #allocation8 [shape = 'u8[16384]{0}', space=vmem, size = 0x4000, scoped, tag = 'output window, operand 0, single buffered']
    %12 = vsyncpa [#allocation3], 0
    %13 = vsyncpa [#allocation6], 0
    %14 = vsyncpa [#allocation4], 0
    // Predicated region
    $region2: #{tpu_custom_call.1} parent=1 // pred_check
      _
    $region3: #{tpu_custom_call.1} parent=1 // pred_check_branch
      %16 = sbr.rel (0) target = $region5
    $region4: #{tpu_custom_call.1} parent=1 // pred_region
      %s18 = ssub.s32 512, 512
      %19 = vsyncadd [#allocation3], %s18
      %s20 = sshll.u32 [#allocation2], 4
      %s21 = int_to_ptr.vmem [resolvable:$true] %s20
      %26 = dma.hbm_to_vmem [thread:$0]  %s0, 512, %s21, [#allocation3], 128, 128, 8
    $region5: #{tpu_custom_call.1} parent=1 // pred_fallthru
      _
    // Predicated region
    $region6: #{tpu_custom_call.1} parent=1 // pred_check
      _
    $region7: #{tpu_custom_call.1} parent=1 // pred_check_branch
      %28 = sbr.rel (0) target = $region9
    $region8: #{tpu_custom_call.1} parent=1 // pred_region
      %s30 = ssub.s32 3072, 3072
      %31 = vsyncadd [#allocation6], %s30
      %s32 = sshll.u32 [#allocation5], 4
      %s33 = int_to_ptr.vmem [resolvable:$true] %s32
      %38 = dma.hbm_to_vmem [thread:$0]  %s1, 3072, %s33, [#allocation6], 64, 64, 4
    $region9: #{tpu_custom_call.1} parent=1 // pred_fallthru
      _
    // Predicated region
    $region10: #{tpu_custom_call.1} parent=1 // pred_check
      _
    $region11: #{tpu_custom_call.1} parent=1 // pred_check_branch
      %40 = sbr.rel (0) target = $region13
    $region12: #{tpu_custom_call.1} parent=1 // pred_region
      %s42 = ssub.s32 3072, 3072
      %43 = vsyncadd [#allocation6], %s42
      %s44 = sshll.u32 [#allocation7], 4
      %s45 = int_to_ptr.vmem [resolvable:$true] %s44
      %50 = dma.hbm_to_vmem [thread:$0]  %s2, 3072, %s45, [#allocation6], 64, 64, 4
    $region13: #{tpu_custom_call.1} parent=1 // pred_fallthru
      _
    // Predicated region
    $region14: #{tpu_custom_call.1} parent=1 // pred_check
      _
    $region15: #{tpu_custom_call.1} parent=1 // pred_check_branch
      %52 = sbr.rel (0) target = $region17
    $region16: #{tpu_custom_call.1} parent=1 // pred_region
      _
    $region17: #{tpu_custom_call.1} parent=1 // pred_fallthru
      _
    // Predicated region
    $region18: #{tpu_custom_call.1} parent=1 // pred_check
      _
    $region19: #{tpu_custom_call.1} parent=1 // pred_check_branch
      %54 = sbr.rel (0) target = $region21
    $region20: #{tpu_custom_call.1} parent=1 // pred_region
      _
    $region21: #{tpu_custom_call.1} parent=1 // pred_fallthru
      _
    // Predicated region
    $region22: #{tpu_custom_call.1} parent=1 // pred_check
      _
    $region23: #{tpu_custom_call.1} parent=1 // pred_check_branch
      %56 = sbr.rel (0) target = $region25
    $region24: #{tpu_custom_call.1} parent=1 // pred_region
      _
    $region25: #{tpu_custom_call.1} parent=1 // pred_fallthru
      _
    // Predicated region
    $region26: #{tpu_custom_call.1} parent=1 // pred_check
      _
    $region27: #{tpu_custom_call.1} parent=1 // pred_check_branch
      %58 = sbr.rel (0) target = $region29
    $region28: #{tpu_custom_call.1} parent=1 // pred_region
      _
    $region29: #{tpu_custom_call.1} parent=1 // pred_fallthru
      _
    // Predicated region
    $region30: #{tpu_custom_call.1} parent=1 // pred_check
      _
    $region31: #{tpu_custom_call.1} parent=1 // pred_check_branch
      %60 = sbr.rel (0) target = $region33
    $region32: #{tpu_custom_call.1} parent=1 // pred_region
      %61 = dma.done [#allocation3], 512
    $region33: #{tpu_custom_call.1} parent=1 // pred_fallthru
      _
    // Predicated region
    $region34: #{tpu_custom_call.1} parent=1 // pred_check
      _
    $region35: #{tpu_custom_call.1} parent=1 // pred_check_branch
      %63 = sbr.rel (0) target = $region37
    $region36: #{tpu_custom_call.1} parent=1 // pred_region
      %64 = dma.done [#allocation6], 3072
    $region37: #{tpu_custom_call.1} parent=1 // pred_fallthru
      _
    // Predicated region
    $region38: #{tpu_custom_call.1} parent=1 // pred_check
      _
    $region39: #{tpu_custom_call.1} parent=1 // pred_check_branch
      %66 = sbr.rel (0) target = $region41
    $region40: #{tpu_custom_call.1} parent=1 // pred_region
      %67 = dma.done [#allocation6], 3072
    $region41: #{tpu_custom_call.1} parent=1 // pred_fallthru
      _
    %v69 = vlaneseq
    %v70 = vshrl.u32 %v69, 7
    %v71 = vadd.s32 %v70, 8
    %v72 = vld [vmem:[#allocation2] sm:$0xff]
    %v73 = vld [vmem:[#allocation2 + $0x8] sm:$0xff]
    %v74 = vld [vmem:[#allocation2 + $0x10] sm:$0xff]
    %v75 = vld [vmem:[#allocation2 + $0x18] sm:$0xff]
    %v76 = vpack.c.bf16 %v73, %v72
    %v77 = vpack.c.bf16 %v75, %v74
    %v78 = vld [vmem:[#allocation5] sm:$0xf]
    %v79 = vld [vmem:[#allocation5 + $0x4] sm:$0xf]
    %v80 = vld [vmem:[#allocation5 + $0x8] sm:$0xf]
    %v81 = vld [vmem:[#allocation5 + $0xc] sm:$0xf]
    %v82 = vld [vmem:[#allocation5 + $0x10] sm:$0xf]
    %v83 = vld [vmem:[#allocation5 + $0x14] sm:$0xf]
    %v84 = vld [vmem:[#allocation5 + $0x18] sm:$0xf]
    %v85 = vld [vmem:[#allocation5 + $0x1c] sm:$0xf]
    %v86 = vld [vmem:[#allocation5 + $0x20] sm:$0xf]
    %v87 = vld [vmem:[#allocation5 + $0x24] sm:$0xf]
    %v88 = vld [vmem:[#allocation5 + $0x28] sm:$0xf]
    %v89 = vld [vmem:[#allocation5 + $0x2c] sm:$0xf]
    %v90 = vld [vmem:[#allocation5 + $0x30] sm:$0xf]
    %v91 = vld [vmem:[#allocation5 + $0x34] sm:$0xf]
    %v92 = vld [vmem:[#allocation5 + $0x38] sm:$0xf]
    %v93 = vld [vmem:[#allocation5 + $0x3c] sm:$0xf]
    %v110 = vunpack.c.l.b16 %v78
    %v111 = vunpack.c.l.b16 %v79
    %v112 = vunpack.c.l.b16 %v80
    %v113 = vunpack.c.l.b16 %v81
    %v114 = vunpack.c.l.b16 %v82
    %v115 = vunpack.c.l.b16 %v83
    %v116 = vunpack.c.l.b16 %v84
    %v117 = vunpack.c.l.b16 %v85
    %v118 = vunpack.c.l.b16 %v86
    %v119 = vunpack.c.l.b16 %v87
    %v120 = vunpack.c.l.b16 %v88
    %v121 = vunpack.c.l.b16 %v89
    %v122 = vunpack.c.l.b16 %v90
    %v123 = vunpack.c.l.b16 %v91
    %v124 = vunpack.c.l.b16 %v92
    %v125 = vunpack.c.l.b16 %v93
    %v126 = vpack.c.b16 %v111, %v110
    %v127 = vpack.c.b16 %v113, %v112
    %v128 = vpack.c.b16 %v115, %v114
    %v129 = vpack.c.b16 %v117, %v116
    %v130 = vpack.c.b16 %v119, %v118
    %v131 = vpack.c.b16 %v121, %v120
    %v132 = vpack.c.b16 %v123, %v122
    %v133 = vpack.c.b16 %v125, %v124
    %142 = vmatprep.subr.bf16.mxu0 0
    %143 = vmatpush1.bf16.msra.mxu0 %v133
    %144 = vmatprep.subr.bf16.mxu0 0
    %145 = vmatpush1.bf16.msra.mxu0 %v132
    %146 = vmatprep.subr.bf16.mxu0 0
    %147 = vmatpush1.bf16.msra.mxu0 %v131
    %148 = vmatprep.subr.bf16.mxu0 0
    %149 = vmatpush1.bf16.msra.mxu0 %v130
    %150 = vmatprep.subr.bf16.mxu0 0
    %151 = vmatpush1.bf16.msra.mxu0 %v129
    %152 = vmatprep.subr.bf16.mxu0 0
    %153 = vmatpush1.bf16.msra.mxu0 %v128
    %154 = vmatprep.subr.bf16.mxu0 0
    %155 = vmatpush1.bf16.msra.mxu0 %v127
    %156 = vmatprep.subr.bf16.mxu0 0
    %157 = vmatpush1.bf16.msra.mxu0 %v126
    %158 = vmatprep.subr.bf16.mxu0 0
    %159 = vmatpush2.bf16.msra.mxu0 0
    %160 = vmatprep.subr.bf16.mxu0 0
    %161 = vmatpush2.bf16.msra.mxu0 0
    %162 = vmatprep.subr.bf16.mxu0 0
    %163 = vmatpush2.bf16.msra.mxu0 0
    %164 = vmatprep.subr.bf16.mxu0 0
    %165 = vmatpush2.bf16.msra.mxu0 0
    %166 = vmatprep.subr.bf16.mxu0 0
    %167 = vmatpush2.bf16.msra.mxu0 0
    %168 = vmatprep.subr.bf16.mxu0 0
    %169 = vmatpush2.bf16.msra.mxu0 0
    %170 = vmatprep.subr.bf16.mxu0 0
    %171 = vmatpush2.bf16.msra.mxu0 0
    %172 = vmatprep.subr.bf16.mxu0 0
    %173 = vmatpush2.bf16.msra.mxu0 0
    %174 = vmatprep.mubr.bf16.mxu0 0
    %175 = vmatmul.mubr.bf16.gmra.mxu0 %v76
    %v176 = vpop.f32.mrf.mxu0
    %v177 = vadd.f32 0.0, %v176
    %v178 = vpop.f32.mrf.mxu0
    %v179 = vpop.f32.mrf.mxu0
    %v180 = vadd.f32 0.0, %v179
    %v181 = vpop.f32.mrf.mxu0
    %182 = vmatprep.mubr.bf16.mxu0 0
    %183 = vmatmul.mubr.bf16.gmra.mxu0 %v77
    %v184 = vpop.f32.mrf.mxu0
    %v185 = vadd.f32 0.0, %v184
    %v186 = vpop.f32.mrf.mxu0
    %v187 = vpop.f32.mrf.mxu0
    %v188 = vadd.f32 0.0, %v187
    %v189 = vpop.f32.mrf.mxu0
    %190 = vdwg.mxu0
    %s191 = scalar_lea.vmem [#allocation5], 64
    %v192 = vld [vmem:[%s191] sm:$0xf]
    %v193 = vld [vmem:[%s191 + $0x4] sm:$0xf]
    %v194 = vld [vmem:[%s191 + $0x8] sm:$0xf]
    %v195 = vld [vmem:[%s191 + $0xc] sm:$0xf]
    %v196 = vld [vmem:[%s191 + $0x10] sm:$0xf]
    %v197 = vld [vmem:[%s191 + $0x14] sm:$0xf]
    %v198 = vld [vmem:[%s191 + $0x18] sm:$0xf]
    %v199 = vld [vmem:[%s191 + $0x1c] sm:$0xf]
    %v200 = vld [vmem:[%s191 + $0x20] sm:$0xf]
    %v201 = vld [vmem:[%s191 + $0x24] sm:$0xf]
    %v202 = vld [vmem:[%s191 + $0x28] sm:$0xf]
    %v203 = vld [vmem:[%s191 + $0x2c] sm:$0xf]
    %v204 = vld [vmem:[%s191 + $0x30] sm:$0xf]
    %v205 = vld [vmem:[%s191 + $0x34] sm:$0xf]
    %v206 = vld [vmem:[%s191 + $0x38] sm:$0xf]
    %v207 = vld [vmem:[%s191 + $0x3c] sm:$0xf]
    %s208 = scalar_lea.vmem [#allocation5], 128
    %v209 = vld [vmem:[%s208] sm:$0xf]
    %v210 = vld [vmem:[%s208 + $0x4] sm:$0xf]
    %v211 = vld [vmem:[%s208 + $0x8] sm:$0xf]
    %v212 = vld [vmem:[%s208 + $0xc] sm:$0xf]
    %v213 = vld [vmem:[%s208 + $0x10] sm:$0xf]
    %v214 = vld [vmem:[%s208 + $0x14] sm:$0xf]
    %v215 = vld [vmem:[%s208 + $0x18] sm:$0xf]
    %v216 = vld [vmem:[%s208 + $0x1c] sm:$0xf]
    %v217 = vld [vmem:[%s208 + $0x20] sm:$0xf]
    %v218 = vld [vmem:[%s208 + $0x24] sm:$0xf]
    %v219 = vld [vmem:[%s208 + $0x28] sm:$0xf]
    %v220 = vld [vmem:[%s208 + $0x2c] sm:$0xf]
    %v221 = vld [vmem:[%s208 + $0x30] sm:$0xf]
    %v222 = vld [vmem:[%s208 + $0x34] sm:$0xf]
    %v223 = vld [vmem:[%s208 + $0x38] sm:$0xf]
    %v224 = vld [vmem:[%s208 + $0x3c] sm:$0xf]
    %v241 = vunpack.c.l.b16 %v209
    %v242 = vunpack.c.l.b16 %v210
    %v243 = vunpack.c.l.b16 %v211
    %v244 = vunpack.c.l.b16 %v212
    %v245 = vunpack.c.l.b16 %v213
    %v246 = vunpack.c.l.b16 %v214
    %v247 = vunpack.c.l.b16 %v215
    %v248 = vunpack.c.l.b16 %v216
    %v249 = vunpack.c.l.b16 %v217
    %v250 = vunpack.c.l.b16 %v218
    %v251 = vunpack.c.l.b16 %v219
    %v252 = vunpack.c.l.b16 %v220
    %v253 = vunpack.c.l.b16 %v221
    %v254 = vunpack.c.l.b16 %v222
    %v255 = vunpack.c.l.b16 %v223
    %v256 = vunpack.c.l.b16 %v224
    %v257 = vpack.c.b16 %v242, %v241
    %v258 = vpack.c.b16 %v244, %v243
    %v259 = vpack.c.b16 %v246, %v245
    %v260 = vpack.c.b16 %v248, %v247
    %v261 = vpack.c.b16 %v250, %v249
    %v262 = vpack.c.b16 %v252, %v251
    %v263 = vpack.c.b16 %v254, %v253
    %v264 = vpack.c.b16 %v256, %v255
    %273 = vmatprep.subr.bf16.mxu0 0
    %274 = vmatpush1.bf16.msra.mxu0 %v264
    %275 = vmatprep.subr.bf16.mxu0 0
    %276 = vmatpush1.bf16.msra.mxu0 %v263
    %277 = vmatprep.subr.bf16.mxu0 0
    %278 = vmatpush1.bf16.msra.mxu0 %v262
    %279 = vmatprep.subr.bf16.mxu0 0
    %280 = vmatpush1.bf16.msra.mxu0 %v261
    %281 = vmatprep.subr.bf16.mxu0 0
    %282 = vmatpush1.bf16.msra.mxu0 %v260
    %283 = vmatprep.subr.bf16.mxu0 0
    %284 = vmatpush1.bf16.msra.mxu0 %v259
    %285 = vmatprep.subr.bf16.mxu0 0
    %286 = vmatpush1.bf16.msra.mxu0 %v258
    %287 = vmatprep.subr.bf16.mxu0 0
    %288 = vmatpush1.bf16.msra.mxu0 %v257
    %289 = vmatprep.subr.bf16.mxu0 0
    %290 = vmatpush2.bf16.msra.mxu0 0
    %291 = vmatprep.subr.bf16.mxu0 0
    %292 = vmatpush2.bf16.msra.mxu0 0
    %293 = vmatprep.subr.bf16.mxu0 0
    %294 = vmatpush2.bf16.msra.mxu0 0
    %295 = vmatprep.subr.bf16.mxu0 0
    %296 = vmatpush2.bf16.msra.mxu0 0
    %297 = vmatprep.subr.bf16.mxu0 0
    %298 = vmatpush2.bf16.msra.mxu0 0
    %299 = vmatprep.subr.bf16.mxu0 0
    %300 = vmatpush2.bf16.msra.mxu0 0
    %301 = vmatprep.subr.bf16.mxu0 0
    %302 = vmatpush2.bf16.msra.mxu0 0
    %303 = vmatprep.subr.bf16.mxu0 0
    %304 = vmatpush2.bf16.msra.mxu0 0
    %305 = vmatprep.mubr.bf16.mxu0 0
    %306 = vmatmul.mubr.bf16.gmra.mxu0 %v76
    %v307 = vpop.f32.mrf.mxu0
    %v308 = vadd.f32 0.0, %v307
    %v309 = vpop.f32.mrf.mxu0
    %v310 = vpop.f32.mrf.mxu0
    %v311 = vadd.f32 0.0, %v310
    %v312 = vpop.f32.mrf.mxu0
    %313 = vmatprep.mubr.bf16.mxu0 0
    %314 = vmatmul.mubr.bf16.gmra.mxu0 %v77
    %v315 = vpop.f32.mrf.mxu0
    %v316 = vadd.f32 0.0, %v315
    %v317 = vpop.f32.mrf.mxu0
    %v318 = vpop.f32.mrf.mxu0
    %v319 = vadd.f32 0.0, %v318
    %v320 = vpop.f32.mrf.mxu0
    %321 = vdwg.mxu0
    %vm322 = vcmp.eq.s32.totalorder %v70, 0
    %vm323 = vcmp.eq.s32.totalorder %v71, 0
    %v324 = vrot.slane %v177, 7
    %v325 = vrot.slane %v180, 7
    %v326 = vrot.slane %v185, 7
    %v327 = vrot.slane %v188, 7
    %vm328 = vcmp.lt.s32.totalorder %v70, 1
    %v329 = vsel %vm328, %v326, %v327
    %v330 = vsel %vm328, %v325, %v326
    %v331 = vsel %vm328, %v324, %v325
    %v332 = vsel %vm328, %v327, %v324
    %v333 = vsel %vm322, 0.0, %v332
    %v334 = vsel %vm323, 0.0, %v331
    %v335 = vsel %vm322, 0.0, %v330
    %v336 = vsel %vm323, 0.0, %v329
    %vm337 = vcmp.eq.s32.totalorder %v70, 15
    %vm338 = vcmp.eq.s32.totalorder %v71, 15
    %v339 = vrot.slane %v308, 1
    %v340 = vrot.slane %v311, 1
    %v341 = vrot.slane %v316, 1
    %v342 = vrot.slane %v319, 1
    %vm343 = vcmp.lt.s32.totalorder %v70, 7
    %v344 = vsel %vm343, %v341, %v342
    %v345 = vsel %vm343, %v340, %v341
    %v346 = vsel %vm343, %v339, %v340
    %v347 = vsel %vm343, %v342, %v339
    %v348 = vsel %vm337, 0.0, %v346
    %v349 = vsel %vm338, 0.0, %v345
    %v350 = vsel %vm337, 0.0, %v344
    %v351 = vsel %vm338, 0.0, %v347
    %v368 = vunpack.c.l.b16 %v192
    %v369 = vunpack.c.l.b16 %v193
    %v370 = vunpack.c.l.b16 %v194
    %v371 = vunpack.c.l.b16 %v195
    %v372 = vunpack.c.l.b16 %v196
    %v373 = vunpack.c.l.b16 %v197
    %v374 = vunpack.c.l.b16 %v198
    %v375 = vunpack.c.l.b16 %v199
    %v376 = vunpack.c.l.b16 %v200
    %v377 = vunpack.c.l.b16 %v201
    %v378 = vunpack.c.l.b16 %v202
    %v379 = vunpack.c.l.b16 %v203
    %v380 = vunpack.c.l.b16 %v204
    %v381 = vunpack.c.l.b16 %v205
    %v382 = vunpack.c.l.b16 %v206
    %v383 = vunpack.c.l.b16 %v207
    %v384 = vpack.c.b16 %v369, %v368
    %v385 = vpack.c.b16 %v371, %v370
    %v386 = vpack.c.b16 %v373, %v372
    %v387 = vpack.c.b16 %v375, %v374
    %v388 = vpack.c.b16 %v377, %v376
    %v389 = vpack.c.b16 %v379, %v378
    %v390 = vpack.c.b16 %v381, %v380
    %v391 = vpack.c.b16 %v383, %v382
    %400 = vmatprep.subr.bf16.mxu0 0
    %401 = vmatpush1.bf16.msra.mxu0 %v391
    %402 = vmatprep.subr.bf16.mxu0 0
    %403 = vmatpush1.bf16.msra.mxu0 %v390
    %404 = vmatprep.subr.bf16.mxu0 0
    %405 = vmatpush1.bf16.msra.mxu0 %v389
    %406 = vmatprep.subr.bf16.mxu0 0
    %407 = vmatpush1.bf16.msra.mxu0 %v388
    %408 = vmatprep.subr.bf16.mxu0 0
    %409 = vmatpush1.bf16.msra.mxu0 %v387
    %410 = vmatprep.subr.bf16.mxu0 0
    %411 = vmatpush1.bf16.msra.mxu0 %v386
    %412 = vmatprep.subr.bf16.mxu0 0
    %413 = vmatpush1.bf16.msra.mxu0 %v385
    %414 = vmatprep.subr.bf16.mxu0 0
    %415 = vmatpush1.bf16.msra.mxu0 %v384
    %416 = vmatprep.subr.bf16.mxu0 0
    %417 = vmatpush2.bf16.msra.mxu0 0
    %418 = vmatprep.subr.bf16.mxu0 0
    %419 = vmatpush2.bf16.msra.mxu0 0
    %420 = vmatprep.subr.bf16.mxu0 0
    %421 = vmatpush2.bf16.msra.mxu0 0
    %422 = vmatprep.subr.bf16.mxu0 0
    %423 = vmatpush2.bf16.msra.mxu0 0
    %424 = vmatprep.subr.bf16.mxu0 0
    %425 = vmatpush2.bf16.msra.mxu0 0
    %426 = vmatprep.subr.bf16.mxu0 0
    %427 = vmatpush2.bf16.msra.mxu0 0
    %428 = vmatprep.subr.bf16.mxu0 0
    %429 = vmatpush2.bf16.msra.mxu0 0
    %430 = vmatprep.subr.bf16.mxu0 0
    %431 = vmatpush2.bf16.msra.mxu0 0
    %432 = vmatprep.mubr.bf16.mxu0 0
    %433 = vmatmul.mubr.bf16.gmra.mxu0 %v76
    %v434 = vpop.f32.mrf.mxu0
    %v435 = vadd.f32 %v333, %v434
    %v436 = vpop.f32.mrf.mxu0
    %v437 = vpop.f32.mrf.mxu0
    %v438 = vadd.f32 %v334, %v437
    %v439 = vpop.f32.mrf.mxu0
    %440 = vmatprep.mubr.bf16.mxu0 0
    %441 = vmatmul.mubr.bf16.gmra.mxu0 %v77
    %v442 = vpop.f32.mrf.mxu0
    %v443 = vadd.f32 %v335, %v442
    %v444 = vpop.f32.mrf.mxu0
    %v445 = vpop.f32.mrf.mxu0
    %v446 = vadd.f32 %v336, %v445
    %v447 = vpop.f32.mrf.mxu0
    %448 = vdwg.mxu0
    %v449 = vadd.f32 %v435, %v348
    %v450 = vadd.f32 %v438, %v349
    %v451 = vadd.f32 %v443, %v350
    %v452 = vadd.f32 %v446, %v351
    %v453 = vadd.f32 %v449, %v450
    %v454 = vadd.f32 %v453, %v451
    %v455 = vadd.f32 %v454, %v452
    %v456 = vrot.slane %v455, 4
    %v457 = vadd.f32 %v455, %v456
    %v458 = vrot.slane %v457, 2
    %v459 = vadd.f32 %v457, %v458
    %v460 = vrot.slane %v459, 1
    %v461 = vadd.f32 %v459, %v460
    %v462 = vmul.f32 %v449, %v449
    %v463 = vmul.f32 %v450, %v450
    %v464 = vmul.f32 %v451, %v451
    %v465 = vmul.f32 %v452, %v452
    %v466 = vadd.f32 %v462, %v463
    %v467 = vadd.f32 %v466, %v464
    %v468 = vadd.f32 %v467, %v465
    %v469 = vrot.slane %v468, 4
    %v470 = vadd.f32 %v468, %v469
    %v471 = vrot.slane %v470, 2
    %v472 = vadd.f32 %v470, %v471
    %v473 = vrot.slane %v472, 1
    %v474 = vadd.f32 %v472, %v473
    %475 = vrot.lane.b32.xlu0 %v461, 64
    %v476 = vpop.permute.xlu0 %475
    %v477 = vadd.f32 %v461, %v476
    %478 = vrot.lane.b32.xlu0 %v474, 64
    %v479 = vpop.permute.xlu0 %478
    %v480 = vadd.f32 %v474, %v479
    %481 = vrot.lane.b32.xlu0 %v477, 32
    %v482 = vpop.permute.xlu0 %481
    %v483 = vadd.f32 %v477, %v482
    %484 = vrot.lane.b32.xlu0 %v480, 32
    %v485 = vpop.permute.xlu0 %484
    %v486 = vadd.f32 %v480, %v485
    %487 = vrot.lane.b32.xlu0 %v483, 16
    %v488 = vpop.permute.xlu0 %487
    %v489 = vadd.f32 %v483, %v488
    %490 = vrot.lane.b32.xlu0 %v486, 16
    %v491 = vpop.permute.xlu0 %490
    %v492 = vadd.f32 %v486, %v491
    %493 = vrot.lane.b32.xlu0 %v489, 8
    %v494 = vpop.permute.xlu0 %493
    %v495 = vadd.f32 %v489, %v494
    %496 = vrot.lane.b32.xlu0 %v492, 8
    %v497 = vpop.permute.xlu0 %496
    %v498 = vadd.f32 %v492, %v497
    %v499 = vmul.f32 %v495, 0.001953125
    %v500 = vmul.f32 %v498, 0.001953125
    %v501 = vmul.f32 %v499, %v499
    %v502 = vsub.f32 %v500, %v501
    %v503 = vmax.f32 %v502, 0.0
    %v504 = vld [vmem:[%s3] sm:$0x1]
    %v505 = vadd.f32 %v503, 1e-05
    %v506 = vrsqrt.pop %v505
    %v507 = vmul.f32 %v504, %v506
    %v508 = vld [vmem:[%s4] sm:$0x1]
    %v509 = vmul.f32 %v499, %v507
    %v510 = vsub.f32 %v508, %v509
    %v512 = vlaneseq
    %v513 = vshrl.u32 %v512, 7
    %v514 = vsub.s32 0, %v513
    %v515 = vrot.slane %v507, %v514
    %v517 = vmul.f32 %v449, %v515
    %v518 = vmul.f32 %v450, %v515
    %v519 = vmul.f32 %v451, %v515
    %v520 = vmul.f32 %v452, %v515
    %v522 = vlaneseq
    %v523 = vshrl.u32 %v522, 7
    %v524 = vsub.s32 0, %v523
    %v525 = vrot.slane %v510, %v524
    %v527 = vadd.f32 %v517, %v525
    %v528 = vadd.f32 %v518, %v525
    %v529 = vadd.f32 %v519, %v525
    %v530 = vadd.f32 %v520, %v525
    %v531 = vmax.f32 %v527, 0.0
    %v532 = vmax.f32 %v528, 0.0
    %v533 = vmax.f32 %v529, 0.0
    %v534 = vmax.f32 %v530, 0.0
    %v535 = vpack.c.bf16 %v532, %v531
    %v536 = vpack.c.bf16 %v534, %v533
    %v537 = vld [vmem:[#allocation7] sm:$0xf]
    %v538 = vld [vmem:[#allocation7 + $0x4] sm:$0xf]
    %v539 = vld [vmem:[#allocation7 + $0x8] sm:$0xf]
    %v540 = vld [vmem:[#allocation7 + $0xc] sm:$0xf]
    %v541 = vld [vmem:[#allocation7 + $0x10] sm:$0xf]
    %v542 = vld [vmem:[#allocation7 + $0x14] sm:$0xf]
    %v543 = vld [vmem:[#allocation7 + $0x18] sm:$0xf]
    %v544 = vld [vmem:[#allocation7 + $0x1c] sm:$0xf]
    %v545 = vld [vmem:[#allocation7 + $0x20] sm:$0xf]
    %v546 = vld [vmem:[#allocation7 + $0x24] sm:$0xf]
    %v547 = vld [vmem:[#allocation7 + $0x28] sm:$0xf]
    %v548 = vld [vmem:[#allocation7 + $0x2c] sm:$0xf]
    %v549 = vld [vmem:[#allocation7 + $0x30] sm:$0xf]
    %v550 = vld [vmem:[#allocation7 + $0x34] sm:$0xf]
    %v551 = vld [vmem:[#allocation7 + $0x38] sm:$0xf]
    %v552 = vld [vmem:[#allocation7 + $0x3c] sm:$0xf]
    %v569 = vunpack.c.l.b16 %v537
    %v570 = vunpack.c.l.b16 %v538
    %v571 = vunpack.c.l.b16 %v539
    %v572 = vunpack.c.l.b16 %v540
    %v573 = vunpack.c.l.b16 %v541
    %v574 = vunpack.c.l.b16 %v542
    %v575 = vunpack.c.l.b16 %v543
    %v576 = vunpack.c.l.b16 %v544
    %v577 = vunpack.c.l.b16 %v545
    %v578 = vunpack.c.l.b16 %v546
    %v579 = vunpack.c.l.b16 %v547
    %v580 = vunpack.c.l.b16 %v548
    %v581 = vunpack.c.l.b16 %v549
    %v582 = vunpack.c.l.b16 %v550
    %v583 = vunpack.c.l.b16 %v551
    %v584 = vunpack.c.l.b16 %v552
    %v585 = vpack.c.b16 %v570, %v569
    %v586 = vpack.c.b16 %v572, %v571
    %v587 = vpack.c.b16 %v574, %v573
    %v588 = vpack.c.b16 %v576, %v575
    %v589 = vpack.c.b16 %v578, %v577
    %v590 = vpack.c.b16 %v580, %v579
    %v591 = vpack.c.b16 %v582, %v581
    %v592 = vpack.c.b16 %v584, %v583
    %601 = vmatprep.subr.bf16.mxu0 0
    %602 = vmatpush1.bf16.msra.mxu0 %v592
    %603 = vmatprep.subr.bf16.mxu0 0
    %604 = vmatpush1.bf16.msra.mxu0 %v591
    %605 = vmatprep.subr.bf16.mxu0 0
    %606 = vmatpush1.bf16.msra.mxu0 %v590
    %607 = vmatprep.subr.bf16.mxu0 0
    %608 = vmatpush1.bf16.msra.mxu0 %v589
    %609 = vmatprep.subr.bf16.mxu0 0
    %610 = vmatpush1.bf16.msra.mxu0 %v588
    %611 = vmatprep.subr.bf16.mxu0 0
    %612 = vmatpush1.bf16.msra.mxu0 %v587
    %613 = vmatprep.subr.bf16.mxu0 0
    %614 = vmatpush1.bf16.msra.mxu0 %v586
    %615 = vmatprep.subr.bf16.mxu0 0
    %616 = vmatpush1.bf16.msra.mxu0 %v585
    %617 = vmatprep.subr.bf16.mxu0 0
    %618 = vmatpush2.bf16.msra.mxu0 0
    %619 = vmatprep.subr.bf16.mxu0 0
    %620 = vmatpush2.bf16.msra.mxu0 0
    %621 = vmatprep.subr.bf16.mxu0 0
    %622 = vmatpush2.bf16.msra.mxu0 0
    %623 = vmatprep.subr.bf16.mxu0 0
    %624 = vmatpush2.bf16.msra.mxu0 0
    %625 = vmatprep.subr.bf16.mxu0 0
    %626 = vmatpush2.bf16.msra.mxu0 0
    %627 = vmatprep.subr.bf16.mxu0 0
    %628 = vmatpush2.bf16.msra.mxu0 0
    %629 = vmatprep.subr.bf16.mxu0 0
    %630 = vmatpush2.bf16.msra.mxu0 0
    %631 = vmatprep.subr.bf16.mxu0 0
    %632 = vmatpush2.bf16.msra.mxu0 0
    %633 = vmatprep.mubr.bf16.mxu0 0
    %634 = vmatmul.mubr.bf16.gmra.mxu0 %v535
    %v635 = vpop.f32.mrf.mxu0
    %v636 = vadd.f32 0.0, %v635
    %v637 = vpop.f32.mrf.mxu0
    %v638 = vpop.f32.mrf.mxu0
    %v639 = vadd.f32 0.0, %v638
    %v640 = vpop.f32.mrf.mxu0
    %641 = vmatprep.mubr.bf16.mxu0 0
    %642 = vmatmul.mubr.bf16.gmra.mxu0 %v536
    %v643 = vpop.f32.mrf.mxu0
    %v644 = vadd.f32 0.0, %v643
    %v645 = vpop.f32.mrf.mxu0
    %v646 = vpop.f32.mrf.mxu0
    %v647 = vadd.f32 0.0, %v646
    %v648 = vpop.f32.mrf.mxu0
    %649 = vdwg.mxu0
    %s650 = scalar_lea.vmem [#allocation7], 64
    %v651 = vld [vmem:[%s650] sm:$0xf]
    %v652 = vld [vmem:[%s650 + $0x4] sm:$0xf]
    %v653 = vld [vmem:[%s650 + $0x8] sm:$0xf]
    %v654 = vld [vmem:[%s650 + $0xc] sm:$0xf]
    %v655 = vld [vmem:[%s650 + $0x10] sm:$0xf]
    %v656 = vld [vmem:[%s650 + $0x14] sm:$0xf]
    %v657 = vld [vmem:[%s650 + $0x18] sm:$0xf]
    %v658 = vld [vmem:[%s650 + $0x1c] sm:$0xf]
    %v659 = vld [vmem:[%s650 + $0x20] sm:$0xf]
    %v660 = vld [vmem:[%s650 + $0x24] sm:$0xf]
    %v661 = vld [vmem:[%s650 + $0x28] sm:$0xf]
    %v662 = vld [vmem:[%s650 + $0x2c] sm:$0xf]
    %v663 = vld [vmem:[%s650 + $0x30] sm:$0xf]
    %v664 = vld [vmem:[%s650 + $0x34] sm:$0xf]
    %v665 = vld [vmem:[%s650 + $0x38] sm:$0xf]
    %v666 = vld [vmem:[%s650 + $0x3c] sm:$0xf]
    %s667 = scalar_lea.vmem [#allocation7], 128
    %v668 = vld [vmem:[%s667] sm:$0xf]
    %v669 = vld [vmem:[%s667 + $0x4] sm:$0xf]
    %v670 = vld [vmem:[%s667 + $0x8] sm:$0xf]
    %v671 = vld [vmem:[%s667 + $0xc] sm:$0xf]
    %v672 = vld [vmem:[%s667 + $0x10] sm:$0xf]
    %v673 = vld [vmem:[%s667 + $0x14] sm:$0xf]
    %v674 = vld [vmem:[%s667 + $0x18] sm:$0xf]
    %v675 = vld [vmem:[%s667 + $0x1c] sm:$0xf]
    %v676 = vld [vmem:[%s667 + $0x20] sm:$0xf]
    %v677 = vld [vmem:[%s667 + $0x24] sm:$0xf]
    %v678 = vld [vmem:[%s667 + $0x28] sm:$0xf]
    %v679 = vld [vmem:[%s667 + $0x2c] sm:$0xf]
    %v680 = vld [vmem:[%s667 + $0x30] sm:$0xf]
    %v681 = vld [vmem:[%s667 + $0x34] sm:$0xf]
    %v682 = vld [vmem:[%s667 + $0x38] sm:$0xf]
    %v683 = vld [vmem:[%s667 + $0x3c] sm:$0xf]
    %v700 = vunpack.c.l.b16 %v668
    %v701 = vunpack.c.l.b16 %v669
    %v702 = vunpack.c.l.b16 %v670
    %v703 = vunpack.c.l.b16 %v671
    %v704 = vunpack.c.l.b16 %v672
    %v705 = vunpack.c.l.b16 %v673
    %v706 = vunpack.c.l.b16 %v674
    %v707 = vunpack.c.l.b16 %v675
    %v708 = vunpack.c.l.b16 %v676
    %v709 = vunpack.c.l.b16 %v677
    %v710 = vunpack.c.l.b16 %v678
    %v711 = vunpack.c.l.b16 %v679
    %v712 = vunpack.c.l.b16 %v680
    %v713 = vunpack.c.l.b16 %v681
    %v714 = vunpack.c.l.b16 %v682
    %v715 = vunpack.c.l.b16 %v683
    %v716 = vpack.c.b16 %v701, %v700
    %v717 = vpack.c.b16 %v703, %v702
    %v718 = vpack.c.b16 %v705, %v704
    %v719 = vpack.c.b16 %v707, %v706
    %v720 = vpack.c.b16 %v709, %v708
    %v721 = vpack.c.b16 %v711, %v710
    %v722 = vpack.c.b16 %v713, %v712
    %v723 = vpack.c.b16 %v715, %v714
    %732 = vmatprep.subr.bf16.mxu0 0
    %733 = vmatpush1.bf16.msra.mxu0 %v723
    %734 = vmatprep.subr.bf16.mxu0 0
    %735 = vmatpush1.bf16.msra.mxu0 %v722
    %736 = vmatprep.subr.bf16.mxu0 0
    %737 = vmatpush1.bf16.msra.mxu0 %v721
    %738 = vmatprep.subr.bf16.mxu0 0
    %739 = vmatpush1.bf16.msra.mxu0 %v720
    %740 = vmatprep.subr.bf16.mxu0 0
    %741 = vmatpush1.bf16.msra.mxu0 %v719
    %742 = vmatprep.subr.bf16.mxu0 0
    %743 = vmatpush1.bf16.msra.mxu0 %v718
    %744 = vmatprep.subr.bf16.mxu0 0
    %745 = vmatpush1.bf16.msra.mxu0 %v717
    %746 = vmatprep.subr.bf16.mxu0 0
    %747 = vmatpush1.bf16.msra.mxu0 %v716
    %748 = vmatprep.subr.bf16.mxu0 0
    %749 = vmatpush2.bf16.msra.mxu0 0
    %750 = vmatprep.subr.bf16.mxu0 0
    %751 = vmatpush2.bf16.msra.mxu0 0
    %752 = vmatprep.subr.bf16.mxu0 0
    %753 = vmatpush2.bf16.msra.mxu0 0
    %754 = vmatprep.subr.bf16.mxu0 0
    %755 = vmatpush2.bf16.msra.mxu0 0
    %756 = vmatprep.subr.bf16.mxu0 0
    %757 = vmatpush2.bf16.msra.mxu0 0
    %758 = vmatprep.subr.bf16.mxu0 0
    %759 = vmatpush2.bf16.msra.mxu0 0
    %760 = vmatprep.subr.bf16.mxu0 0
    %761 = vmatpush2.bf16.msra.mxu0 0
    %762 = vmatprep.subr.bf16.mxu0 0
    %763 = vmatpush2.bf16.msra.mxu0 0
    %764 = vmatprep.mubr.bf16.mxu0 0
    %765 = vmatmul.mubr.bf16.gmra.mxu0 %v535
    %v766 = vpop.f32.mrf.mxu0
    %v767 = vadd.f32 0.0, %v766
    %v768 = vpop.f32.mrf.mxu0
    %v769 = vpop.f32.mrf.mxu0
    %v770 = vadd.f32 0.0, %v769
    %v771 = vpop.f32.mrf.mxu0
    %772 = vmatprep.mubr.bf16.mxu0 0
    %773 = vmatmul.mubr.bf16.gmra.mxu0 %v536
    %v774 = vpop.f32.mrf.mxu0
    %v775 = vadd.f32 0.0, %v774
    %v776 = vpop.f32.mrf.mxu0
    %v777 = vpop.f32.mrf.mxu0
    %v778 = vadd.f32 0.0, %v777
    %v779 = vpop.f32.mrf.mxu0
    %780 = vdwg.mxu0
    %v781 = vrot.slane %v636, 7
    %v782 = vrot.slane %v639, 7
    %v783 = vrot.slane %v644, 7
    %v784 = vrot.slane %v647, 7
    %v785 = vsel %vm328, %v783, %v784
    %v786 = vsel %vm328, %v782, %v783
    %v787 = vsel %vm328, %v781, %v782
    %v788 = vsel %vm328, %v784, %v781
    %v789 = vsel %vm322, 0.0, %v788
    %v790 = vsel %vm323, 0.0, %v787
    %v791 = vsel %vm322, 0.0, %v786
    %v792 = vsel %vm323, 0.0, %v785
    %v793 = vrot.slane %v767, 1
    %v794 = vrot.slane %v770, 1
    %v795 = vrot.slane %v775, 1
    %v796 = vrot.slane %v778, 1
    %v797 = vsel %vm343, %v795, %v796
    %v798 = vsel %vm343, %v794, %v795
    %v799 = vsel %vm343, %v793, %v794
    %v800 = vsel %vm343, %v796, %v793
    %v801 = vsel %vm337, 0.0, %v799
    %v802 = vsel %vm338, 0.0, %v798
    %v803 = vsel %vm337, 0.0, %v797
    %v804 = vsel %vm338, 0.0, %v800
    %v821 = vunpack.c.l.b16 %v651
    %v822 = vunpack.c.l.b16 %v652
    %v823 = vunpack.c.l.b16 %v653
    %v824 = vunpack.c.l.b16 %v654
    %v825 = vunpack.c.l.b16 %v655
    %v826 = vunpack.c.l.b16 %v656
    %v827 = vunpack.c.l.b16 %v657
    %v828 = vunpack.c.l.b16 %v658
    %v829 = vunpack.c.l.b16 %v659
    %v830 = vunpack.c.l.b16 %v660
    %v831 = vunpack.c.l.b16 %v661
    %v832 = vunpack.c.l.b16 %v662
    %v833 = vunpack.c.l.b16 %v663
    %v834 = vunpack.c.l.b16 %v664
    %v835 = vunpack.c.l.b16 %v665
    %v836 = vunpack.c.l.b16 %v666
    %v837 = vpack.c.b16 %v822, %v821
    %v838 = vpack.c.b16 %v824, %v823
    %v839 = vpack.c.b16 %v826, %v825
    %v840 = vpack.c.b16 %v828, %v827
    %v841 = vpack.c.b16 %v830, %v829
    %v842 = vpack.c.b16 %v832, %v831
    %v843 = vpack.c.b16 %v834, %v833
    %v844 = vpack.c.b16 %v836, %v835
    %853 = vmatprep.subr.bf16.mxu0 0
    %854 = vmatpush1.bf16.msra.mxu0 %v844
    %855 = vmatprep.subr.bf16.mxu0 0
    %856 = vmatpush1.bf16.msra.mxu0 %v843
    %857 = vmatprep.subr.bf16.mxu0 0
    %858 = vmatpush1.bf16.msra.mxu0 %v842
    %859 = vmatprep.subr.bf16.mxu0 0
    %860 = vmatpush1.bf16.msra.mxu0 %v841
    %861 = vmatprep.subr.bf16.mxu0 0
    %862 = vmatpush1.bf16.msra.mxu0 %v840
    %863 = vmatprep.subr.bf16.mxu0 0
    %864 = vmatpush1.bf16.msra.mxu0 %v839
    %865 = vmatprep.subr.bf16.mxu0 0
    %866 = vmatpush1.bf16.msra.mxu0 %v838
    %867 = vmatprep.subr.bf16.mxu0 0
    %868 = vmatpush1.bf16.msra.mxu0 %v837
    %869 = vmatprep.subr.bf16.mxu0 0
    %870 = vmatpush2.bf16.msra.mxu0 0
    %871 = vmatprep.subr.bf16.mxu0 0
    %872 = vmatpush2.bf16.msra.mxu0 0
    %873 = vmatprep.subr.bf16.mxu0 0
    %874 = vmatpush2.bf16.msra.mxu0 0
    %875 = vmatprep.subr.bf16.mxu0 0
    %876 = vmatpush2.bf16.msra.mxu0 0
    %877 = vmatprep.subr.bf16.mxu0 0
    %878 = vmatpush2.bf16.msra.mxu0 0
    %879 = vmatprep.subr.bf16.mxu0 0
    %880 = vmatpush2.bf16.msra.mxu0 0
    %881 = vmatprep.subr.bf16.mxu0 0
    %882 = vmatpush2.bf16.msra.mxu0 0
    %883 = vmatprep.subr.bf16.mxu0 0
    %884 = vmatpush2.bf16.msra.mxu0 0
    %885 = vmatprep.mubr.bf16.mxu0 0
    %886 = vmatmul.mubr.bf16.gmra.mxu0 %v535
    %v887 = vpop.f32.mrf.mxu0
    %v888 = vadd.f32 %v789, %v887
    %v889 = vpop.f32.mrf.mxu0
    %v890 = vpop.f32.mrf.mxu0
    %v891 = vadd.f32 %v790, %v890
    %v892 = vpop.f32.mrf.mxu0
    %893 = vmatprep.mubr.bf16.mxu0 0
    %894 = vmatmul.mubr.bf16.gmra.mxu0 %v536
    %v895 = vpop.f32.mrf.mxu0
    %v896 = vadd.f32 %v791, %v895
    %v897 = vpop.f32.mrf.mxu0
    %v898 = vpop.f32.mrf.mxu0
    %v899 = vadd.f32 %v792, %v898
    %v900 = vpop.f32.mrf.mxu0
    %901 = vdwg.mxu0
    %v902 = vadd.f32 %v888, %v801
    %v903 = vadd.f32 %v891, %v802
    %v904 = vadd.f32 %v896, %v803
    %v905 = vadd.f32 %v899, %v804
    %v906 = vadd.f32 %v902, %v903
    %v907 = vadd.f32 %v906, %v904
    %v908 = vadd.f32 %v907, %v905
    %v909 = vrot.slane %v908, 4
    %v910 = vadd.f32 %v908, %v909
    %v911 = vrot.slane %v910, 2
    %v912 = vadd.f32 %v910, %v911
    %v913 = vrot.slane %v912, 1
    %v914 = vadd.f32 %v912, %v913
    %v915 = vmul.f32 %v902, %v902
    %v916 = vmul.f32 %v903, %v903
    %v917 = vmul.f32 %v904, %v904
    %v918 = vmul.f32 %v905, %v905
    %v919 = vadd.f32 %v915, %v916
    %v920 = vadd.f32 %v919, %v917
    %v921 = vadd.f32 %v920, %v918
    %v922 = vrot.slane %v921, 4
    %v923 = vadd.f32 %v921, %v922
    %v924 = vrot.slane %v923, 2
    %v925 = vadd.f32 %v923, %v924
    %v926 = vrot.slane %v925, 1
    %v927 = vadd.f32 %v925, %v926
    %928 = vrot.lane.b32.xlu0 %v914, 64
    %v929 = vpop.permute.xlu0 %928
    %v930 = vadd.f32 %v914, %v929
    %931 = vrot.lane.b32.xlu0 %v927, 64
    %v932 = vpop.permute.xlu0 %931
    %v933 = vadd.f32 %v927, %v932
    %934 = vrot.lane.b32.xlu0 %v930, 32
    %v935 = vpop.permute.xlu0 %934
    %v936 = vadd.f32 %v930, %v935
    %937 = vrot.lane.b32.xlu0 %v933, 32
    %v938 = vpop.permute.xlu0 %937
    %v939 = vadd.f32 %v933, %v938
    %940 = vrot.lane.b32.xlu0 %v936, 16
    %v941 = vpop.permute.xlu0 %940
    %v942 = vadd.f32 %v936, %v941
    %943 = vrot.lane.b32.xlu0 %v939, 16
    %v944 = vpop.permute.xlu0 %943
    %v945 = vadd.f32 %v939, %v944
    %946 = vrot.lane.b32.xlu0 %v942, 8
    %v947 = vpop.permute.xlu0 %946
    %v948 = vadd.f32 %v942, %v947
    %949 = vrot.lane.b32.xlu0 %v945, 8
    %v950 = vpop.permute.xlu0 %949
    %v951 = vadd.f32 %v945, %v950
    %v952 = vmul.f32 %v948, 0.001953125
    %v953 = vmul.f32 %v951, 0.001953125
    %v954 = vmul.f32 %v952, %v952
    %v955 = vsub.f32 %v953, %v954
    %v956 = vmax.f32 %v955, 0.0
    %v957 = vld [vmem:[%s5] sm:$0x1]
    %v958 = vadd.f32 %v956, 1e-05
    %v959 = vrsqrt.pop %v958
    %v960 = vmul.f32 %v957, %v959
    %v961 = vld [vmem:[%s6] sm:$0x1]
    %v962 = vmul.f32 %v952, %v960
    %v963 = vsub.f32 %v961, %v962
    %v965 = vlaneseq
    %v966 = vshrl.u32 %v965, 7
    %v967 = vsub.s32 0, %v966
    %v968 = vrot.slane %v960, %v967
    %v970 = vmul.f32 %v902, %v968
    %v971 = vmul.f32 %v903, %v968
    %v972 = vmul.f32 %v904, %v968
    %v973 = vmul.f32 %v905, %v968
    %v975 = vlaneseq
    %v976 = vshrl.u32 %v975, 7
    %v977 = vsub.s32 0, %v976
    %v978 = vrot.slane %v963, %v977
    %v980 = vadd.f32 %v970, %v978
    %v981 = vadd.f32 %v971, %v978
    %v982 = vadd.f32 %v972, %v978
    %v983 = vadd.f32 %v973, %v978
    %v984 = vadd.f32 %v980, %v72
    %v985 = vadd.f32 %v981, %v73
    %v986 = vadd.f32 %v982, %v74
    %v987 = vadd.f32 %v983, %v75
    %v988 = vmax.f32 %v984, 0.0
    %v989 = vmax.f32 %v985, 0.0
    %v990 = vmax.f32 %v986, 0.0
    %v991 = vmax.f32 %v987, 0.0
    %992 = vst [vmem:[#allocation8] sm:$0xff] %v988
    %993 = vst [vmem:[#allocation8 + $0x8] sm:$0xff] %v989
    %994 = vst [vmem:[#allocation8 + $0x10] sm:$0xff] %v990
    %995 = vst [vmem:[#allocation8 + $0x18] sm:$0xff] %v991
    // Predicated region
    $region42: #{tpu_custom_call.1} parent=1 // pred_check
      _
    $region43: #{tpu_custom_call.1} parent=1 // pred_check_branch
      %997 = sbr.rel (0) target = $region45
    $region44: #{tpu_custom_call.1} parent=1 // pred_region
      %s999 = ssub.s32 512, 512
      %1000 = vsyncadd [#allocation4], %s999
      %s1001 = sshll.u32 [#allocation8], 4
      %s1002 = int_to_ptr.vmem [resolvable:$true] %s1001
      %1007 = dma.vmem_to_hbm [thread:$0]  %s1002, 512, %s7, [#allocation4], 128, 128, 8
    $region45: #{tpu_custom_call.1} parent=1 // pred_fallthru
      _
    // Predicated region
    $region46: #{tpu_custom_call.1} parent=1 // pred_check
      _
    $region47: #{tpu_custom_call.1} parent=1 // pred_check_branch
      %1009 = sbr.rel (0) target = $region49
    $region48: #{tpu_custom_call.1} parent=1 // pred_region
      %1010 = dma.done [#allocation4], 512
    $region49: #{tpu_custom_call.1} parent=1 // pred_fallthru
      _
    %1011 = vsyncpa [#allocation3], 1
    %1012 = vsyncpa [#allocation6], 1
    %1013 = vsyncpa [#allocation4], 1

</llo_original>
